<compile_context>
chip_gen: v5e
topology: v5e:2x2
jax: 0.10.0
libtpu: 0.0.40
codegen_flags: <defaults>
</compile_context>

<pallas_src>
import functools

import jax
import jax.numpy as jnp
from jax.experimental import pallas as pl
from jax.experimental.pallas import tpu as pltpu

MASK_VAL = -9e15


def _round_up(x, m):
    return ((x + m - 1) // m) * m


# ---------------------------------------------------------------------------
# Kernel 1: projection.  Wh = h @ W ; f1 = Wh . a1 ; f2 = Wh . a2   (row-tiled)
# ---------------------------------------------------------------------------
def _proj_kernel(h_ref, w_ref, a1_ref, a2_ref, wh_ref, f1_ref, f2_ref):
    # K = F_in is tiny -> MXU underfilled, but this is O(N*F) and runs once.
    wh = jnp.dot(h_ref[...], w_ref[...], preferred_element_type=jnp.float32)
    wh_ref[...] = wh.astype(wh_ref.dtype)          # bf16 store, MXU-ready
    # VPU multiply + cross-lane (XLU) reduce; f1/f2 stay f32 for the softmax.
    f1_ref[...] = jnp.sum(wh * a1_ref[...], axis=1, keepdims=True)
    f2_ref[...] = jnp.sum(wh * a2_ref[...], axis=1, keepdims=True)


# ---------------------------------------------------------------------------
# Kernel 2: masked attention + online softmax + att @ Wh (block-sparse tiles)
# ---------------------------------------------------------------------------
def _attn_kernel(cnt_ref, cid_ref, f1_ref, f2_ref, adj_ref, wh_ref, out_ref,
                 m_ref, l_ref, acc_ref, *, alpha, concat, bc, wh_resident):
    i = pl.program_id(0)
    j = pl.program_id(1)

    @pl.when(j == 0)
    def _():
        m_ref[...] = jnp.full(m_ref.shape, -jnp.inf, dtype=jnp.float32)
        l_ref[...] = jnp.zeros(l_ref.shape, dtype=jnp.float32)
        acc_ref[...] = jnp.zeros(acc_ref.shape, dtype=jnp.float32)

    # Only column blocks that contain at least one edge are processed; beyond
    # cnt the schedule repeats the last valid block (no DMA) and we skip.
    @pl.when(j < cnt_ref[i])
    def _():
        # e[i, j] = LeakyReLU(f1[i] + f2[j]); f2 arrives lane-major -> free bcast.
        e = f1_ref[...] + f2_ref[...]               # (br,1)+(1,bc) -> (br,bc)
        e = jnp.where(e > 0, e, alpha * e)          # LeakyReLU (VPU)
        mask = adj_ref[...] > 0                     # int8 stream, no convert
        e = jnp.where(mask, e, MASK_VAL)

        # Online softmax update.
        m_prev = m_ref[...]
        m_new = jnp.maximum(m_prev, jnp.max(e, axis=1, keepdims=True))
        scale = jnp.exp(m_prev - m_new)
        p = jnp.exp(e - m_new)
        p = jnp.where(mask, p, 0.0)                 # explicit mask (robust)
        l_ref[...] = scale * l_ref[...] + jnp.sum(p, axis=1, keepdims=True)

        if wh_resident:
            start = pl.multiple_of(cid_ref[i, j] * bc, bc)
            wh_tile = wh_ref[pl.ds(start, bc), :]   # resident bf16 Wh slice
        else:
            wh_tile = wh_ref[...]                   # streamed bf16 Wh tile
        acc_ref[...] = scale * acc_ref[...] + jnp.dot(
            p.astype(wh_tile.dtype), wh_tile, preferred_element_type=jnp.float32)
        m_ref[...] = m_new

    @pl.when(j == pl.num_programs(1) - 1)
    def _():
        hp = acc_ref[...] / l_ref[...]              # exact; once per row block
        if concat:
            # ELU via expm1 (EUP); min() clamps the dead branch.
            hp = jnp.where(hp > 0, hp, jnp.expm1(jnp.minimum(hp, 0.0)))
        out_ref[...] = hp.astype(out_ref.dtype)


def gat_layer(h, adj, W_t, a1, a2, *, alpha=0.2, concat=True,
              block_rows=512, block_cols=2048):
    """Single GAT head forward.

    h   : (N, F_in) float32
    adj : (N, N); only adj > 0 is used
    W_t : (F_in, F_out) float32  (nn.Linear weight, pre-transposed)
    a1, a2 : (F_out, 1) float32  (split of the attention vector a = [a1; a2])
    """
    N, F_in = h.shape
    F_out = W_t.shape[1]
    f32, bf16 = jnp.float32, jnp.bfloat16

    # ---- tiled geometry -----------------------------------------------------
    F_pad = _round_up(max(F_out, 128), 128)        # lane-dense output writeback
    # Column tile: multiple of 128 (lane dim of adj), clamped to padded N.
    bc = max(128, min(_round_up(block_cols, 128), _round_up(N, 128)))
    # Row tile: multiple of 32 (int8 sublane tiling), must divide bc.
    br = max(32, min(_round_up(block_rows, 32), _round_up(N, 32), bc))
    while bc % br != 0:
        br -= 32
    # v7x: two TensorCores split the "parallel" row axis -> prefer >= 2 blocks.
    while (_round_up(N, br) // br) < 2:
        nbr = br // 2
        if nbr < 32 or nbr % 32 != 0 or bc % nbr != 0:
            break
        if _round_up(N, nbr) // nbr <= _round_up(N, br) // br:
            break
        br = nbr
    N_pad_r = _round_up(N, br)          # adj rows / output rows
    N_pad_c = _round_up(N, bc)          # adj cols / Wh rows  (>= N_pad_r)
    nb_r, nb_c = N_pad_r // br, N_pad_c // bc

    h_p = jnp.pad(h.astype(f32), ((0, N_pad_c - N), (0, 0)))
    W_p = jnp.pad(W_t.astype(f32), ((0, 0), (0, F_pad - F_out)))
    a1_row = jnp.pad(a1.astype(f32).reshape(1, F_out), ((0, 0), (0, F_pad - F_out)))
    a2_row = jnp.pad(a2.astype(f32).reshape(1, F_out), ((0, 0), (0, F_pad - F_out)))
    adj_i8 = jnp.pad((adj > 0).astype(jnp.int8),
                     ((0, N_pad_r - N), (0, N_pad_c - N)))

    # ---- kernel 1: Wh (bf16), f1, f2 ---------------------------------------
    wh, f1, f2 = pl.pallas_call(
        _proj_kernel,
        out_shape=(jax.ShapeDtypeStruct((N_pad_c, F_pad), bf16),
                   jax.ShapeDtypeStruct((N_pad_c, 1), f32),
                   jax.ShapeDtypeStruct((N_pad_c, 1), f32)),
        grid_spec=pltpu.PrefetchScalarGridSpec(
            num_scalar_prefetch=0,
            grid=(N_pad_c // br,),
            in_specs=[pl.BlockSpec((br, F_in), lambda i: (i, 0)),
                      pl.BlockSpec((F_in, F_pad), lambda i: (0, 0)),
                      pl.BlockSpec((1, F_pad), lambda i: (0, 0)),
                      pl.BlockSpec((1, F_pad), lambda i: (0, 0))],
            out_specs=[pl.BlockSpec((br, F_pad), lambda i: (i, 0)),
                       pl.BlockSpec((br, 1), lambda i: (i, 0)),
                       pl.BlockSpec((br, 1), lambda i: (i, 0))]),
        compiler_params=pltpu.CompilerParams(
            dimension_semantics=("parallel",)),
    )(h_p, W_p, a1_row, a2_row)

    # f2 delivered lane-major (1, N_pad_c): sublane broadcast, no XLU transpose.
    f2_row = f2.reshape(1, N_pad_c)

    # ---- block-sparse schedule (scalar prefetch) ----------------------------
    # counts[i]  : number of column blocks with any edge for row block i
    # col_ids[i] : those column-block indices (ascending), padded with the last
    #              valid id so skipped steps re-use the resident tile (no DMA).
    blk_nnz = (adj_i8.reshape(nb_r, br, nb_c, bc) > 0).any(axis=(1, 3))
    counts = blk_nnz.sum(axis=1).astype(jnp.int32)
    col_idx = jnp.arange(nb_c, dtype=jnp.int32)[None, :]
    key = jnp.where(blk_nnz, col_idx, nb_c + col_idx)
    order = jnp.argsort(key, axis=1).astype(jnp.int32)
    last_valid = jnp.maximum(counts - 1, 0)[:, None]
    col_ids = jnp.take_along_axis(order, jnp.minimum(col_idx, last_valid), axis=1)
    col_ids = col_ids.astype(jnp.int32)

    # ---- VMEM plan / Wh residency decision ----------------------------------
    def _plan_bytes(resident):
        wh_b = (2 * N_pad_c * F_pad * 2) if resident else (2 * bc * F_pad * 2)
        return (2 * br * 128 * 4          # f1 (lane-padded)
                + 2 * 8 * bc * 4          # f2 (sublane-padded)
                + 2 * br * bc             # adj (int8), double-buffered
                + 2 * br * F_pad * 4      # output
                + wh_b                    # Wh (bf16)
                + 2 * br * 128 * 4        # m, l scratch
                + br * F_pad * 4)         # accumulator scratch

    wh_resident = _plan_bytes(True) <= 40 * 1024 * 1024   # v7x-safe per-TC budget
    need = _plan_bytes(wh_resident)

    cp_kwargs = dict(dimension_semantics=("parallel", "arbitrary"))
    if need > 16 * 1024 * 1024:           # only raise above smallest default limit
        cp_kwargs["vmem_limit_bytes"] = int(min(48 * 1024 * 1024, need + (2 << 20)))

    if wh_resident:
        wh_spec = pl.BlockSpec((N_pad_c, F_pad), lambda i, j, cnt, cid: (0, 0))
    else:
        wh_spec = pl.BlockSpec((bc, F_pad), lambda i, j, cnt, cid: (cid[i, j], 0))

    cost = pl.CostEstimate(
        flops=2 * N_pad_r * N_pad_c * F_pad + 8 * N_pad_r * N_pad_c,
        transcendentals=N_pad_r * N_pad_c + 2 * N_pad_c,
        bytes_accessed=(N_pad_r * N_pad_c                 # adj (int8)
                        + N_pad_c * F_pad * 2             # Wh (bf16, once)
                        + N_pad_r * F_pad * 4             # output
                        + 2 * N_pad_c * 4))               # f1, f2

    kernel = functools.partial(_attn_kernel, alpha=alpha, concat=concat,
                               bc=bc, wh_resident=wh_resident)
    out_p = pl.pallas_call(
        kernel,
        out_shape=jax.ShapeDtypeStruct((N_pad_r, F_pad), f32),
        grid_spec=pltpu.PrefetchScalarGridSpec(
            num_scalar_prefetch=2,
            grid=(nb_r, nb_c),            # reduction (col) axis last
            in_specs=[pl.BlockSpec((br, 1), lambda i, j, cnt, cid: (i, 0)),
                      pl.BlockSpec((1, bc), lambda i, j, cnt, cid: (0, cid[i, j])),
                      pl.BlockSpec((br, bc), lambda i, j, cnt, cid: (i, cid[i, j])),
                      wh_spec],
            out_specs=pl.BlockSpec((br, F_pad), lambda i, j, cnt, cid: (i, 0)),
            scratch_shapes=[pltpu.VMEM((br, 1), f32),        # running max
                            pltpu.VMEM((br, 1), f32),        # running sum
                            pltpu.VMEM((br, F_pad), f32)]),  # accumulator
        compiler_params=pltpu.CompilerParams(**cp_kwargs),
        cost_estimate=cost,
    )(counts, col_ids, f1, f2_row, adj_i8, wh)

    return out_p[:N, :F_out]


def reference(h, adj, W_t, a1, a2, alpha=0.2, concat=True):
    Wh = h @ W_t
    e = Wh @ a1 + (Wh @ a2).T
    e = jnp.where(e > 0, e, alpha * e)
    e = jnp.where(adj > 0, e, MASK_VAL)
    att = jax.nn.softmax(e, axis=1)
    hp = att @ Wh
    return jax.nn.elu(hp) if concat else hp


if __name__ == "__main__":
    key = jax.random.PRNGKey(0)
    F_in, F_out = 8, 32
    k_h, k_adj, k_w, k_a, k_h2, k_adj2 = jax.random.split(key, 6)

    # nn.Linear(in, out, bias=False): weight (out, in)
    w_bound = 1.0 / jnp.sqrt(F_in * 1.0)
    W = jax.random.uniform(k_w, (F_out, F_in), minval=-w_bound, maxval=w_bound,
                           dtype=jnp.float32)
    W_t = W.T                                             # (F_in, F_out)

    # a: (2*F_out, 1), xavier_uniform with gain=1.414
    a_bound = 1.414 * jnp.sqrt(6.0 / (2 * F_out + 1))
    a = jax.random.uniform(k_a, (2 * F_out, 1), minval=-a_bound, maxval=a_bound,
                           dtype=jnp.float32)
    a1, a2 = a[:F_out], a[F_out:]

    # ---- test 1: small dense graph ------------------------------------------
    N = 16
    h = jax.random.normal(k_h, (N, F_in), dtype=jnp.float32)
    adj = (jax.random.uniform(k_adj, (N, N)) > 0.5).astype(jnp.float32)
    adj = adj.at[jnp.arange(N), jnp.arange(N)].set(1.0)   # self loops

    out = gat_layer(h, adj, W_t, a1, a2)
    jax.block_until_ready(out)
    ref = reference(h, adj, W_t, a1, a2)
    assert out.shape == (N, F_out)
    # Tolerance covers the bf16 MXU path in att @ Wh.
    assert jnp.allclose(out, ref, atol=2e-2, rtol=2e-2), "mismatch vs reference (test 1)"

    # ---- test 2: multi-block, block-sparse adjacency ------------------------
    N2 = 300
    h2 = jax.random.normal(k_h2, (N2, F_in), dtype=jnp.float32)
    adj2 = jnp.zeros((N2, N2), dtype=jnp.float32)
    dense_part = (jax.random.uniform(k_adj2, (100, 100)) > 0.5).astype(jnp.float32)
    adj2 = adj2.at[:100, :100].set(dense_part)            # edges only among first 100
    adj2 = adj2.at[jnp.arange(N2), jnp.arange(N2)].set(1.0)

    out2 = gat_layer(h2, adj2, W_t, a1, a2, block_rows=256, block_cols=256)
    jax.block_until_ready(out2)
    ref2 = reference(h2, adj2, W_t, a1, a2)
    assert out2.shape == (N2, F_out)
    assert jnp.allclose(out2, ref2, atol=2e-2, rtol=2e-2), "mismatch vs reference (test 2)"

    print("KERNEL_OK")
</pallas_src>

<mosaic_0001>
module attributes {stable_mosaic.version = 11 : i64} {
  func.func @_proj_kernel(%arg0: i32, %arg1: memref<32x8xf32, #tpu.memory_space<vmem>>, %arg2: memref<8x128xf32, #tpu.memory_space<vmem>>, %arg3: memref<1x128xf32, #tpu.memory_space<vmem>>, %arg4: memref<1x128xf32, #tpu.memory_space<vmem>>, %arg5: memref<32x128xbf16, #tpu.memory_space<vmem>>, %arg6: memref<32x1xf32, #tpu.memory_space<vmem>>, %arg7: memref<32x1xf32, #tpu.memory_space<vmem>>) attributes {dimension_semantics = [#tpu.dimension_semantics<parallel>], iteration_bounds = array<i64: 4>, scalar_prefetch = 0 : i64, scratch_operands = 0 : i64, tpu.core_type = #tpu.core_type<tc>, window_params = [{transform_indices = @transform_0, window_bounds = array<i64: 32, 8>}, {pipeline_mode = #tpu.pipeline_mode<synchronous>, transform_indices = @transform_1, window_bounds = array<i64: 8, 128>}, {pipeline_mode = #tpu.pipeline_mode<synchronous>, transform_indices = @transform_2, window_bounds = array<i64: 1, 128>}, {pipeline_mode = #tpu.pipeline_mode<synchronous>, transform_indices = @transform_3, window_bounds = array<i64: 1, 128>}, {transform_indices = @transform_4, window_bounds = array<i64: 32, 128>}, {transform_indices = @transform_5, window_bounds = array<i64: 32, 1>}, {transform_indices = @transform_6, window_bounds = array<i64: 32, 1>}]} {
    %c0 = arith.constant 0 : index
    %c0_0 = arith.constant 0 : index
    %0 = vector.load %arg1[%c0, %c0_0] : memref<32x8xf32, #tpu.memory_space<vmem>>, vector<32x8xf32>
    %c0_1 = arith.constant 0 : index
    %c0_2 = arith.constant 0 : index
    %1 = vector.load %arg2[%c0_1, %c0_2] : memref<8x128xf32, #tpu.memory_space<vmem>>, vector<8x128xf32>
    %cst = arith.constant dense<0.000000e+00> : vector<32x128xf32>
    %2 = tpu.matmul %0, %1, %cst {dimension_numbers = #tpu.dot_dimension_numbers<[1], [0], [0], [1], [0, 0, 1, 1], [], []>} : vector<32x8xf32>, vector<8x128xf32>, vector<32x128xf32> -> vector<32x128xf32>
    %3 = arith.truncf %2 : vector<32x128xf32> to vector<32x128xbf16>
    %c0_3 = arith.constant 0 : index
    %c0_4 = arith.constant 0 : index
    %4 = vector.load %arg5[%c0_3, %c0_4] : memref<32x128xbf16, #tpu.memory_space<vmem>>, vector<32x128xbf16>
    tpu.vector_store %arg5[%c0_3, %c0_4], %3 {strides = array<i32>} : memref<32x128xbf16, #tpu.memory_space<vmem>>, vector<32x128xbf16>,
    %c0_5 = arith.constant 0 : index
    %c0_6 = arith.constant 0 : index
    %5 = vector.load %arg3[%c0_5, %c0_6] : memref<1x128xf32, #tpu.memory_space<vmem>>, vector<1x128xf32>
    %6 = vector.broadcast %5 : vector<1x128xf32> to vector<32x128xf32>
    %7 = arith.mulf %2, %6 : vector<32x128xf32>
    %cst_7 = arith.constant dense<0.000000e+00> : vector<32xf32>
    %8 = vector.multi_reduction <add>, %7, %cst_7 [1] : vector<32x128xf32> to vector<32xf32>
    %9 = vector.shape_cast %8 : vector<32xf32> to vector<32x1xf32>
    %c0_8 = arith.constant 0 : index
    %c0_9 = arith.constant 0 : index
    %10 = vector.load %arg6[%c0_8, %c0_9] : memref<32x1xf32, #tpu.memory_space<vmem>>, vector<32x1xf32>
    tpu.vector_store %arg6[%c0_8, %c0_9], %9 {strides = array<i32>} : memref<32x1xf32, #tpu.memory_space<vmem>>, vector<32x1xf32>,
    %c0_10 = arith.constant 0 : index
    %c0_11 = arith.constant 0 : index
    %11 = vector.load %arg4[%c0_10, %c0_11] : memref<1x128xf32, #tpu.memory_space<vmem>>, vector<1x128xf32>
    %12 = vector.broadcast %11 : vector<1x128xf32> to vector<32x128xf32>
    %13 = arith.mulf %2, %12 : vector<32x128xf32>
    %cst_12 = arith.constant dense<0.000000e+00> : vector<32xf32>
    %14 = vector.multi_reduction <add>, %13, %cst_12 [1] : vector<32x128xf32> to vector<32xf32>
    %15 = vector.shape_cast %14 : vector<32xf32> to vector<32x1xf32>
    %c0_13 = arith.constant 0 : index
    %c0_14 = arith.constant 0 : index
    %16 = vector.load %arg7[%c0_13, %c0_14] : memref<32x1xf32, #tpu.memory_space<vmem>>, vector<32x1xf32>
    tpu.vector_store %arg7[%c0_13, %c0_14], %15 {strides = array<i32>} : memref<32x1xf32, #tpu.memory_space<vmem>>, vector<32x1xf32>,
    return
  }
  func.func @transform_0(%arg0: i32) -> (i32, i32) {
    %c0_i32 = arith.constant 0 : i32
    %c0_i32_0 = arith.constant 0 : i32
    return %arg0, %c0_i32 : i32, i32
  }
  func.func @transform_1(%arg0: i32) -> (i32, i32) {
    %c0_i32 = arith.constant 0 : i32
    %c0_i32_0 = arith.constant 0 : i32
    %c0_i32_1 = arith.constant 0 : i32
    return %c0_i32, %c0_i32_0 : i32, i32
  }
  func.func @transform_2(%arg0: i32) -> (i32, i32) {
    %c0_i32 = arith.constant 0 : i32
    %c0_i32_0 = arith.constant 0 : i32
    %c0_i32_1 = arith.constant 0 : i32
    return %c0_i32, %c0_i32_0 : i32, i32
  }
  func.func @transform_3(%arg0: i32) -> (i32, i32) {
    %c0_i32 = arith.constant 0 : i32
    %c0_i32_0 = arith.constant 0 : i32
    %c0_i32_1 = arith.constant 0 : i32
    return %c0_i32, %c0_i32_0 : i32, i32
  }
  func.func @transform_4(%arg0: i32) -> (i32, i32) {
    %c0_i32 = arith.constant 0 : i32
    %c0_i32_0 = arith.constant 0 : i32
    return %arg0, %c0_i32 : i32, i32
  }
  func.func @transform_5(%arg0: i32) -> (i32, i32) {
    %c0_i32 = arith.constant 0 : i32
    %c0_i32_0 = arith.constant 0 : i32
    return %arg0, %c0_i32 : i32, i32
  }
  func.func @transform_6(%arg0: i32) -> (i32, i32) {
    %c0_i32 = arith.constant 0 : i32
    %c0_i32_0 = arith.constant 0 : i32
    return %arg0, %c0_i32 : i32, i32
  }
}

</mosaic_0001>

<llo_original>
// kernel: tpu_custom_call.1
$region0: #{tpu_custom_call.1}
  #allocation0 [shape = 'u32[]', space=smem, size = 0x4, offset = 0x4, fixed_abs, tag = 'smem constant byte address 0x4 - core index']
  #allocation1 [shape = 'u32[72,128]{1,0:T(1,128)}', space=vmem, size = 0x9000, scoped, tag = 'internal scratch']
  %s0 = inlined_call_operand.vmem [shape: f32[128,8], index: 0, kind: input, shape index: {}]
  %s1 = inlined_call_operand.vmem [shape: f32[8,128], index: 1, kind: input, shape index: {}]
  %s2 = inlined_call_operand.vmem [shape: f32[1,128], index: 2, kind: input, shape index: {}]
  %s3 = inlined_call_operand.vmem [shape: f32[1,128], index: 3, kind: input, shape index: {}]
  %s4 = inlined_call_operand.hbm [shape: bf16[128,128], index: 4, kind: output, shape index: {0}]
  %s5 = inlined_call_operand.vmem [shape: f32[128,1], index: 5, kind: output, shape index: {1}]
  %s6 = inlined_call_operand.vmem [shape: f32[128,1], index: 6, kind: output, shape index: {2}]
  %7 = xla_tuple %s4, %s5, %s6
  %s8 = sld [smem:[#allocation0]]
  $region65: #{tpu_custom_call.1} parent=0
    _
  %s10 = ssub.s32 1, %s8
  %s11 = scalar_select 0, %s10, %s8
  $region1: #{tpu_custom_call.1} parent=0
    #allocation2 [shape = 'u8[16384]{0}', space=vmem, size = 0x4000, scoped, tag = 'output window, operand 0']
    #allocation3 [shape = 's32[2]{0}', space=sflag, size = 0x8, scoped, tag = 'scoped memory for tpu_custom_call.1']
    %12 = vsyncpa [#allocation3], 0
    %s13 = scalar_lea.sflag [#allocation3], 1
    %14 = vsyncpa %s13, 0
    loop: start=0, step=1, limit=6
    $region2: #{tpu_custom_call.1} parent=1 // loop_pre_header
      _
    $region3: #{tpu_custom_call.1} parent=1 // loop_header
      %s16 = sphi 0, %s20
      %p17 = scmp.ge.s32.totalorder %s16, 6
      %s26 = sphi 0, %s28
      %s29 = sphi 0, %s26
      %s30 = sphi 0, %s29
      %s46 = sphi 0, %s30
      %s50 = sphi 0, %s50
      %s52 = sphi 0, %s50
      %s53 = sphi 0, %s52
      %s67 = sphi 0, %s53
      %s71 = sphi 0, %s71
      %s73 = sphi 0, %s71
      %s74 = sphi 0, %s73
      %s88 = sphi 0, %s74
      %s92 = sphi 0, %s92
      %s94 = sphi 0, %s92
      %s95 = sphi 0, %s94
      %s109 = sphi 0, %s95
      %s115 = sphi 0, %s117
      %s118 = sphi 0, %s115
      %s119 = sphi 0, %s118
      %s135 = sphi 0, %s119
      %s141 = sphi 0, %s143
      %s144 = sphi 0, %s141
      %s145 = sphi 0, %s144
      %s161 = sphi 0, %s145
      %s167 = sphi 0, %s169
      %s170 = sphi 0, %s167
      %s171 = sphi 0, %s170
      %s187 = sphi 0, %s171
    $region4: #{tpu_custom_call.1} parent=1 // loop_header_branch
      %19 = sbr.rel (%p17) target = $region8
    $region5: #{tpu_custom_call.1} parent=1 // loop_body
      %s21 = ssub.s32 %s16, 1
      %s22 = ssub.s32 %s16, 2
      %s23 = sadd.s32 %s16, 1
      %s24 = ssub.s32 %s16, %s23
      %p25 = scmp.eq.s32.totalorder %s24, 0
      %s27 = sadd.s32 %s26, 1
      %s28 = scalar_select %p25, %s26, %s27
      %p31 = pneg %p25
      %p32 = scmp.eq.s32.totalorder %s16, 3
      %p33 = por %p31, %p32
      %p34 = scmp.ne.s32.totalorder %s26, %s29
      %p35 = scmp.eq.s32.totalorder %s16, 0
      %p36 = por %p34, %p35
      %p37 = scmp.ne.s32.totalorder %s26, %s29
      %p38 = scmp.eq.s32.totalorder %s21, 3
      %p39 = por %p37, %p38
      %p40 = scmp.ne.s32.totalorder %s29, %s30
      %p41 = scmp.eq.s32.totalorder %s21, 0
      %p42 = por %p40, %p41
      %p43 = scmp.ne.s32.totalorder %s29, %s30
      %p44 = scmp.eq.s32.totalorder %s22, 3
      %p45 = por %p43, %p44
      %p47 = scmp.ne.s32.totalorder %s30, %s46
      %p48 = scmp.eq.s32.totalorder %s22, 0
      %p49 = por %p47, %p48
      %s51 = sadd.s32 %s50, 1
      %p54 = scmp.eq.s32.totalorder %s16, 3
      %p55 = scmp.ne.s32.totalorder %s50, %s52
      %p56 = scmp.eq.s32.totalorder %s16, 0
      %p57 = por %p55, %p56
      %p58 = scmp.ne.s32.totalorder %s50, %s52
      %p59 = scmp.eq.s32.totalorder %s21, 3
      %p60 = por %p58, %p59
      %p61 = scmp.ne.s32.totalorder %s52, %s53
      %p62 = scmp.eq.s32.totalorder %s21, 0
      %p63 = por %p61, %p62
      %p64 = scmp.ne.s32.totalorder %s52, %s53
      %p65 = scmp.eq.s32.totalorder %s22, 3
      %p66 = por %p64, %p65
      %p68 = scmp.ne.s32.totalorder %s53, %s67
      %p69 = scmp.eq.s32.totalorder %s22, 0
      %p70 = por %p68, %p69
      %s72 = sadd.s32 %s71, 1
      %p75 = scmp.eq.s32.totalorder %s16, 3
      %p76 = scmp.ne.s32.totalorder %s71, %s73
      %p77 = scmp.eq.s32.totalorder %s16, 0
      %p78 = por %p76, %p77
      %p79 = scmp.ne.s32.totalorder %s71, %s73
      %p80 = scmp.eq.s32.totalorder %s21, 3
      %p81 = por %p79, %p80
      %p82 = scmp.ne.s32.totalorder %s73, %s74
      %p83 = scmp.eq.s32.totalorder %s21, 0
      %p84 = por %p82, %p83
      %p85 = scmp.ne.s32.totalorder %s73, %s74
      %p86 = scmp.eq.s32.totalorder %s22, 3
      %p87 = por %p85, %p86
      %p89 = scmp.ne.s32.totalorder %s74, %s88
      %p90 = scmp.eq.s32.totalorder %s22, 0
      %p91 = por %p89, %p90
      %s93 = sadd.s32 %s92, 1
      %p96 = scmp.eq.s32.totalorder %s16, 3
      %p97 = scmp.ne.s32.totalorder %s92, %s94
      %p98 = scmp.eq.s32.totalorder %s16, 0
      %p99 = por %p97, %p98
      %p100 = scmp.ne.s32.totalorder %s92, %s94
      %p101 = scmp.eq.s32.totalorder %s21, 3
      %p102 = por %p100, %p101
      %p103 = scmp.ne.s32.totalorder %s94, %s95
      %p104 = scmp.eq.s32.totalorder %s21, 0
      %p105 = por %p103, %p104
      %p106 = scmp.ne.s32.totalorder %s94, %s95
      %p107 = scmp.eq.s32.totalorder %s22, 3
      %p108 = por %p106, %p107
      %p110 = scmp.ne.s32.totalorder %s95, %s109
      %p111 = scmp.eq.s32.totalorder %s22, 0
      %p112 = por %p110, %p111
      %s113 = ssub.s32 %s16, %s23
      %p114 = scmp.eq.s32.totalorder %s113, 0
      %s116 = sadd.s32 %s115, 1
      %s117 = scalar_select %p114, %s115, %s116
      %p120 = pneg %p114
      %p121 = scmp.eq.s32.totalorder %s16, 3
      %p122 = por %p120, %p121
      %p123 = scmp.ne.s32.totalorder %s115, %s118
      %p124 = scmp.eq.s32.totalorder %s16, 0
      %p125 = por %p123, %p124
      %p126 = scmp.ne.s32.totalorder %s115, %s118
      %p127 = scmp.eq.s32.totalorder %s21, 3
      %p128 = por %p126, %p127
      %p129 = scmp.ne.s32.totalorder %s118, %s119
      %p130 = scmp.eq.s32.totalorder %s21, 0
      %p131 = por %p129, %p130
      %p132 = scmp.ne.s32.totalorder %s118, %s119
      %p133 = scmp.eq.s32.totalorder %s22, 3
      %p134 = por %p132, %p133
      %p136 = scmp.ne.s32.totalorder %s119, %s135
      %p137 = scmp.eq.s32.totalorder %s22, 0
      %p138 = por %p136, %p137
      %s139 = ssub.s32 %s16, %s23
      %p140 = scmp.eq.s32.totalorder %s139, 0
      %s142 = sadd.s32 %s141, 1
      %s143 = scalar_select %p140, %s141, %s142
      %p146 = pneg %p140
      %p147 = scmp.eq.s32.totalorder %s16, 3
      %p148 = por %p146, %p147
      %p149 = scmp.ne.s32.totalorder %s141, %s144
      %p150 = scmp.eq.s32.totalorder %s16, 0
      %p151 = por %p149, %p150
      %p152 = scmp.ne.s32.totalorder %s141, %s144
      %p153 = scmp.eq.s32.totalorder %s21, 3
      %p154 = por %p152, %p153
      %p155 = scmp.ne.s32.totalorder %s144, %s145
      %p156 = scmp.eq.s32.totalorder %s21, 0
      %p157 = por %p155, %p156
      %p158 = scmp.ne.s32.totalorder %s144, %s145
      %p159 = scmp.eq.s32.totalorder %s22, 3
      %p160 = por %p158, %p159
      %p162 = scmp.ne.s32.totalorder %s145, %s161
      %p163 = scmp.eq.s32.totalorder %s22, 0
      %p164 = por %p162, %p163
      %s165 = ssub.s32 %s16, %s23
      %p166 = scmp.eq.s32.totalorder %s165, 0
      %s168 = sadd.s32 %s167, 1
      %s169 = scalar_select %p166, %s167, %s168
      %p172 = pneg %p166
      %p173 = scmp.eq.s32.totalorder %s16, 3
      %p174 = por %p172, %p173
      %p175 = scmp.ne.s32.totalorder %s167, %s170
      %p176 = scmp.eq.s32.totalorder %s16, 0
      %p177 = por %p175, %p176
      %p178 = scmp.ne.s32.totalorder %s167, %s170
      %p179 = scmp.eq.s32.totalorder %s21, 3
      %p180 = por %p178, %p179
      %p181 = scmp.ne.s32.totalorder %s170, %s171
      %p182 = scmp.eq.s32.totalorder %s21, 0
      %p183 = por %p181, %p182
      %p184 = scmp.ne.s32.totalorder %s170, %s171
      %p185 = scmp.eq.s32.totalorder %s22, 3
      %p186 = por %p184, %p185
      %p188 = scmp.ne.s32.totalorder %s171, %s187
      %p189 = scmp.eq.s32.totalorder %s22, 0
      %p190 = por %p188, %p189
      %p191 = scmp.le.s32.totalorder 1, %s16
      %p192 = scmp.lt.s32.totalorder %s16, 5
      %p193 = pnand %p191, %p192
      %p194 = pneg %p193
      // Predicated region
      $region9: #{tpu_custom_call.1} parent=5 // pred_check
        _
      $region10: #{tpu_custom_call.1} parent=5 // pred_check_branch
        %196 = sbr.rel (%p193) target = $region12
      $region11: #{tpu_custom_call.1} parent=5 // pred_region
        %s197 = ssub.s32 %s16, 1
        // Predicated region
        $region13: #{tpu_custom_call.1} parent=11 // pred_check
          %p198 = pneg %p63
        $region14: #{tpu_custom_call.1} parent=11 // pred_check_branch
          %200 = sbr.rel (%p198) target = $region16
        $region15: #{tpu_custom_call.1} parent=11 // pred_region
          _
        $region16: #{tpu_custom_call.1} parent=11 // pred_fallthru
          _
        // Predicated region
        $region17: #{tpu_custom_call.1} parent=11 // pred_check
          %p201 = pneg %p84
        $region18: #{tpu_custom_call.1} parent=11 // pred_check_branch
          %203 = sbr.rel (%p201) target = $region20
        $region19: #{tpu_custom_call.1} parent=11 // pred_region
          _
        $region20: #{tpu_custom_call.1} parent=11 // pred_fallthru
          _
        // Predicated region
        $region21: #{tpu_custom_call.1} parent=11 // pred_check
          %p204 = pneg %p105
        $region22: #{tpu_custom_call.1} parent=11 // pred_check_branch
          %206 = sbr.rel (%p204) target = $region24
        $region23: #{tpu_custom_call.1} parent=11 // pred_region
          _
        $region24: #{tpu_custom_call.1} parent=11 // pred_fallthru
          _
      $region12: #{tpu_custom_call.1} parent=5 // pred_fallthru
        _
      %p207 = scmp.lt.s32.totalorder %s16, 4
      // Predicated region
      $region25: #{tpu_custom_call.1} parent=5 // pred_check
        %p208 = pneg %p207
      $region26: #{tpu_custom_call.1} parent=5 // pred_check_branch
        %210 = sbr.rel (%p208) target = $region28
      $region27: #{tpu_custom_call.1} parent=5 // pred_region
        // Predicated region
        $region29: #{tpu_custom_call.1} parent=27 // pred_check
          %p211 = pneg %p36
        $region30: #{tpu_custom_call.1} parent=27 // pred_check_branch
          %213 = sbr.rel (%p211) target = $region32
        $region31: #{tpu_custom_call.1} parent=27 // pred_region
          %s214 = smul.u32 4, %s16
          %p215 = scmp.lt.s32.totalorder %s214, 15
          %s216 = scalar_select %p215, %s214, 15
          %s217 = smul.addr %s216, 8
          %s218 = scalar_lea.vmem %s0, %s217
          %s219 = smul.u32 4, %s16
        $region32: #{tpu_custom_call.1} parent=27 // pred_fallthru
          _
      $region28: #{tpu_custom_call.1} parent=5 // pred_fallthru
        _
      %p220 = scmp.le.s32.totalorder 1, %s16
      %p221 = scmp.lt.s32.totalorder %s16, 5
      %p222 = pnand %p220, %p221
      %p223 = pneg %p222
      // Predicated region
      $region33: #{tpu_custom_call.1} parent=5 // pred_check
        _
      $region34: #{tpu_custom_call.1} parent=5 // pred_check_branch
        %225 = sbr.rel (%p222) target = $region36
      $region35: #{tpu_custom_call.1} parent=5 // pred_region
        %s226 = ssub.s32 %s16, 1
        %s227 = smul.u32 4, %s21
        %p228 = scmp.lt.s32.totalorder %s227, 15
        %s229 = scalar_select %p228, %s227, 15
        %s230 = smul.addr %s229, 8
        %s231 = scalar_lea.vmem %s0, %s230
        %p232 = pneg %p42
        %p233 = pneg %p39
        %p234 = pneg %p63
        %p235 = pneg %p60
        %p236 = pneg %p84
        %p237 = pneg %p81
        %p238 = pneg %p105
        %p239 = pneg %p102
        %p240 = pneg %p131
        %p241 = pneg %p128
        %s242 = sand.u32 %s118, 1
        %s243 = scalar_lea.sflag [#allocation3], %s242
        %s244 = sand.u32 %s118, 1
        %s245 = smul.addr %s244, 16
        %s246 = scalar_lea.vmem [#allocation2], %s245
        %p247 = pneg %p157
        %p248 = pneg %p154
        %s249 = smul.u32 4, %s21
        %p250 = scmp.lt.s32.totalorder %s249, 15
        %s251 = scalar_select %p250, %s249, 15
        %s252 = smul.addr %s251, 8
        %s253 = scalar_lea.vmem %s5, %s252
        %p254 = pneg %p183
        %p255 = pneg %p180
        %s256 = smul.u32 4, %s21
        %p257 = scmp.lt.s32.totalorder %s256, 15
        %s258 = scalar_select %p257, %s256, 15
        %s259 = smul.addr %s258, 8
        %s260 = scalar_lea.vmem %s6, %s259
        %s261 = smul.u32 4, %s21
        %p262 = scmp.lt.s32.totalorder %s261, 15
        %s263 = scalar_select %p262, %s261, 15
        %s264 = smul.addr %s263, 8
        %s265 = scalar_lea.vmem %s0, %s264
        %s266 = smul.u32 4, %s21
        %s267 = smul.u32 4, %s21
        %s268 = smul.u32 4, %s21
        %p269 = scmp.lt.s32.totalorder %s268, 15
        %s270 = scalar_select %p269, %s268, 15
        %s271 = smul.addr %s270, 8
        %s272 = scalar_lea.vmem %s5, %s271
        %s273 = smul.u32 4, %s21
        %s274 = smul.u32 4, %s21
        %p275 = scmp.lt.s32.totalorder %s274, 15
        %s276 = scalar_select %p275, %s274, 15
        %s277 = smul.addr %s276, 8
        %s278 = scalar_lea.vmem %s6, %s277
        %s279 = smul.u32 4, %s21
        %v280 = vld [vmem:[%s265] sm:$0xff]
        %v281 = vld [vmem:[%s265 + $0x8] sm:$0xff]
        %v282 = vld [vmem:[%s265 + $0x10] sm:$0xff]
        %v283 = vld [vmem:[%s265 + $0x18] sm:$0xff]
        %v284 = vld [vmem:[%s1] sm:$0xff]
        %vm285 = vcmask 64512
        %v287 = vsel %vm285, %v280, 0
        %v290 = vsel %vm285, %v281, 0
        %v293 = vsel %vm285, %v282, 0
        %v296 = vsel %vm285, %v283, 0
        %298 = vmatpush.msra.mxu0 0.0
        %299 = vmatpush.msra.mxu0 0.0
        %300 = vmatpush.msra.mxu0 0.0
        %301 = vmatpush.msra.mxu0 0.0
        %302 = vmatpush.msra.mxu0 0.0
        %303 = vmatpush.msra.mxu0 0.0
        %304 = vmatpush.msra.mxu0 0.0
        %305 = vmatpush.msra.mxu0 0.0
        %306 = vmatpush.msra.mxu0 0.0
        %307 = vmatpush.msra.mxu0 0.0
        %308 = vmatpush.msra.mxu0 0.0
        %309 = vmatpush.msra.mxu0 0.0
        %310 = vmatpush.msra.mxu0 0.0
        %311 = vmatpush.msra.mxu0 0.0
        %312 = vmatpush.msra.mxu0 0.0
        %313 = vmatpush.msra.mxu0 %v284
        %314 = vmatmul.f32.gmra.mxu0 %v287
        %v315 = vpop.f32.mrf.mxu0
        %v316 = vadd.f32 0.0, %v315
        %317 = vmatmul.f32.gmra.mxu0 %v290
        %v318 = vpop.f32.mrf.mxu0
        %v319 = vadd.f32 0.0, %v318
        %320 = vmatmul.f32.gmra.mxu0 %v293
        %v321 = vpop.f32.mrf.mxu0
        %v322 = vadd.f32 0.0, %v321
        %323 = vmatmul.f32.gmra.mxu0 %v296
        %v324 = vpop.f32.mrf.mxu0
        %v325 = vadd.f32 0.0, %v324
        %326 = vdwg.mxu0
        %v327 = vpack.c.bf16 %v316, %v316
        %v328 = vpack.c.bf16 %v319, %v319
        %v329 = vpack.c.bf16 %v322, %v322
        %v330 = vpack.c.bf16 %v325, %v325
        %331 = vst [vmem:[%s246] sm:$0xf] %v327
        %332 = vst [vmem:[%s246 + $0x4] sm:$0xf] %v328
        %333 = vst [vmem:[%s246 + $0x8] sm:$0xf] %v329
        %334 = vst [vmem:[%s246 + $0xc] sm:$0xf] %v330
        %v335 = vld [vmem:[%s2] sm:$0x1]
        %v337 = vperm.slane %v335, 0
        %v339 = vmul.f32 %v316, %v337
        %v340 = vmul.f32 %v319, %v337
        %v341 = vmul.f32 %v322, %v337
        %v342 = vmul.f32 %v325, %v337
        %343 = vadd.xlane.f32.xlu0 %v339
        %v344 = vpop.xlane.xlu0 %343
        %345 = vadd.xlane.f32.xlu0 %v340
        %v346 = vpop.xlane.xlu0 %345
        %347 = vadd.xlane.f32.xlu0 %v341
        %v348 = vpop.xlane.xlu0 %347
        %349 = vadd.xlane.f32.xlu0 %v342
        %v350 = vpop.xlane.xlu0 %349
        %vm351 = vcmask 7168
        %352 = vst.msk [vmem:[%s272] sm:$0xff] %vm351, %v344
        %353 = vst.msk [vmem:[%s272 + $0x8] sm:$0xff] %vm351, %v346
        %354 = vst.msk [vmem:[%s272 + $0x10] sm:$0xff] %vm351, %v348
        %355 = vst.msk [vmem:[%s272 + $0x18] sm:$0xff] %vm351, %v350
        %v356 = vld [vmem:[%s3] sm:$0x1]
        %v358 = vperm.slane %v356, 0
        %v360 = vmul.f32 %v316, %v358
        %v361 = vmul.f32 %v319, %v358
        %v362 = vmul.f32 %v322, %v358
        %v363 = vmul.f32 %v325, %v358
        %364 = vadd.xlane.f32.xlu0 %v360
        %v365 = vpop.xlane.xlu0 %364
        %366 = vadd.xlane.f32.xlu0 %v361
        %v367 = vpop.xlane.xlu0 %366
        %368 = vadd.xlane.f32.xlu0 %v362
        %v369 = vpop.xlane.xlu0 %368
        %370 = vadd.xlane.f32.xlu0 %v363
        %v371 = vpop.xlane.xlu0 %370
        %372 = vst.msk [vmem:[%s278] sm:$0xff] %vm351, %v365
        %373 = vst.msk [vmem:[%s278 + $0x8] sm:$0xff] %vm351, %v367
        %374 = vst.msk [vmem:[%s278 + $0x10] sm:$0xff] %vm351, %v369
        %375 = vst.msk [vmem:[%s278 + $0x18] sm:$0xff] %vm351, %v371
        %s376 = sand.u32 %s118, 1
        %s377 = scalar_lea.sflag [#allocation3], %s376
        %s378 = sand.u32 %s118, 1
        %s379 = smul.addr %s378, 16
        %s380 = scalar_lea.vmem [#allocation2], %s379
        %s381 = smul.u32 4, %s21
        %p382 = scmp.lt.s32.totalorder %s381, 15
        %s383 = scalar_select %p382, %s381, 15
        %s384 = smul.addr %s383, 8
        %s385 = scalar_lea.vmem %s5, %s384
        %s386 = smul.u32 4, %s21
        %p387 = scmp.lt.s32.totalorder %s386, 15
        %s388 = scalar_select %p387, %s386, 15
        %s389 = smul.addr %s388, 8
        %s390 = scalar_lea.vmem %s6, %s389
        // Predicated region
        $region37: #{tpu_custom_call.1} parent=35 // pred_check
          %p391 = pneg %p128
        $region38: #{tpu_custom_call.1} parent=35 // pred_check_branch
          %393 = sbr.rel (%p391) target = $region40
        $region39: #{tpu_custom_call.1} parent=35 // pred_region
          %s394 = smul.u32 4, %s21
          %396 = vsyncadd %s377, 0
          %s397 = smul.addr %s394, 4
          %s398 = scalar_lea.hbm %s4, %s397
          %s399 = sshll.u32 %s380, 4
          %s400 = int_to_ptr.vmem [resolvable:$true] %s399
          %s401 = sshll.u32 %s398, 4
          %s402 = int_to_ptr.hbm [resolvable:$true] %s401
          %407 = dma.vmem_to_hbm [thread:$0]  %s400, 256, %s402, %s377, 64, 64, 4
        $region40: #{tpu_custom_call.1} parent=35 // pred_fallthru
          _
        // Predicated region
        $region41: #{tpu_custom_call.1} parent=35 // pred_check
          %p408 = pneg %p154
        $region42: #{tpu_custom_call.1} parent=35 // pred_check_branch
          %410 = sbr.rel (%p408) target = $region44
        $region43: #{tpu_custom_call.1} parent=35 // pred_region
          %s411 = smul.u32 4, %s21
        $region44: #{tpu_custom_call.1} parent=35 // pred_fallthru
          _
        // Predicated region
        $region45: #{tpu_custom_call.1} parent=35 // pred_check
          %p412 = pneg %p180
        $region46: #{tpu_custom_call.1} parent=35 // pred_check_branch
          %414 = sbr.rel (%p412) target = $region48
        $region47: #{tpu_custom_call.1} parent=35 // pred_region
          %s415 = smul.u32 4, %s21
        $region48: #{tpu_custom_call.1} parent=35 // pred_fallthru
          _
      $region36: #{tpu_custom_call.1} parent=5 // pred_fallthru
        _
      %p416 = scmp.le.s32.totalorder 2, %s16
      // Predicated region
      $region49: #{tpu_custom_call.1} parent=5 // pred_check
        %p417 = pneg %p416
      $region50: #{tpu_custom_call.1} parent=5 // pred_check_branch
        %419 = sbr.rel (%p417) target = $region52
      $region51: #{tpu_custom_call.1} parent=5 // pred_region
        %s420 = ssub.s32 %s16, 2
        // Predicated region
        $region53: #{tpu_custom_call.1} parent=51 // pred_check
          %p421 = pneg %p134
        $region54: #{tpu_custom_call.1} parent=51 // pred_check_branch
          %423 = sbr.rel (%p421) target = $region56
        $region55: #{tpu_custom_call.1} parent=51 // pred_region
          %s424 = sand.u32 %s119, 1
          %s425 = scalar_lea.sflag [#allocation3], %s424
          %s426 = sand.u32 %s119, 1
          %s427 = smul.addr %s426, 16
          %s428 = scalar_lea.vmem [#allocation2], %s427
          %430 = dma.done %s425, 256
        $region56: #{tpu_custom_call.1} parent=51 // pred_fallthru
          _
        // Predicated region
        $region57: #{tpu_custom_call.1} parent=51 // pred_check
          %p431 = pneg %p160
        $region58: #{tpu_custom_call.1} parent=51 // pred_check_branch
          %433 = sbr.rel (%p431) target = $region60
        $region59: #{tpu_custom_call.1} parent=51 // pred_region
          %s434 = smul.u32 4, %s22
          %p435 = scmp.lt.s32.totalorder %s434, 15
          %s436 = scalar_select %p435, %s434, 15
          %s437 = smul.addr %s436, 8
          %s438 = scalar_lea.vmem %s5, %s437
        $region60: #{tpu_custom_call.1} parent=51 // pred_fallthru
          _
        // Predicated region
        $region61: #{tpu_custom_call.1} parent=51 // pred_check
          %p439 = pneg %p186
        $region62: #{tpu_custom_call.1} parent=51 // pred_check_branch
          %441 = sbr.rel (%p439) target = $region64
        $region63: #{tpu_custom_call.1} parent=51 // pred_region
          %s442 = smul.u32 4, %s22
          %p443 = scmp.lt.s32.totalorder %s442, 15
          %s444 = scalar_select %p443, %s442, 15
          %s445 = smul.addr %s444, 8
          %s446 = scalar_lea.vmem %s6, %s445
        $region64: #{tpu_custom_call.1} parent=51 // pred_fallthru
          _
      $region52: #{tpu_custom_call.1} parent=5 // pred_fallthru
        _
    $region6: #{tpu_custom_call.1} parent=1 // loop_footer
      %s20 = sadd.s32 1, %s16
    $region7: #{tpu_custom_call.1} parent=1 // loop_footer_branch
      %15 = sbr.rel target = $region3
    $region8: #{tpu_custom_call.1} parent=1 // loop_exit
      _
    %447 = vsyncpa [#allocation3], 1
    %s448 = scalar_lea.sflag [#allocation3], 1
    %449 = vsyncpa %s448, 1

</llo_original>
